<compile_context>
chip_gen: v6e
topology: v6e:2x2x1
jax: 0.10.0
libtpu: 0.0.40
codegen_flags: <defaults>
</compile_context>

<pallas_src>
import functools

import jax
import jax.numpy as jnp
from jax.experimental import pallas as pl
from jax.experimental.pallas import tpu as pltpu

_LANE = 128
_TARGET_BLOCK_BYTES = 2 * 1024 * 1024  # ~2 MiB per x/out block


def _drop_path_kernel(scale_ref, x_ref, o_ref):
    # scale_ref: (TILE_B, 1) per-sample scale in {0, 1/keep_prob}
    # x_ref / o_ref: (TILE_B, TILE_N) lane-dense tile of flattened activations
    o_ref[...] = x_ref[...] * scale_ref[...]


def _round_up(v, m):
    return (v + m - 1) // m * m


@functools.partial(jax.jit, static_argnames=("keep_prob", "in_place"))
def _drop_path_impl(x, key, *, keep_prob, in_place):
    orig_shape = x.shape
    B = int(orig_shape[0])
    N = 1
    for d in orig_shape[1:]:
        N *= int(d)

    # Per-sample scale = floor(keep_prob + U[0,1)) / keep_prob  (glue, tiny).
    u = jax.random.uniform(key, (B,), dtype=x.dtype)
    scale = (jnp.floor(keep_prob + u) * (1.0 / keep_prob)).astype(x.dtype)
    scale = scale.reshape(B, 1)

    # Flatten per-sample dims; pad lane axis to a multiple of 128 so stores
    # stay unmasked / lane-dense.
    x_flat = x.reshape(B, N)
    n_pad = _round_up(N, _LANE)
    if n_pad != N:
        x_flat = jnp.pad(x_flat, ((0, 0), (0, n_pad - N)))

    itemsize = x.dtype.itemsize
    # Sublane-legal row tile: full batch if small, else a multiple of 8.
    tile_b = B if B < 8 else 8
    # Lane tile sized for ~2 MiB blocks, independent of per-sample N.
    max_tile_n = max(_LANE,
                     (_TARGET_BLOCK_BYTES // (tile_b * itemsize)) // _LANE * _LANE)
    tile_n = min(n_pad, max_tile_n)

    grid = (pl.cdiv(B, tile_b), pl.cdiv(n_pad, tile_n))

    # Resident VMEM ~= double-buffered x + out blocks (+ tiny scale column).
    block_bytes = tile_b * tile_n * itemsize
    vmem_limit = int(min(max(4 * block_bytes + (1 << 20), 16 * 1024 * 1024),
                         64 * 1024 * 1024))

    # Only alias when the caller explicitly allows in-place writes (x donated);
    # otherwise XLA would insert a protective copy and add HBM traffic.
    alias = {1: 0} if in_place else {}

    out_flat = pl.pallas_call(
        _drop_path_kernel,
        out_shape=jax.ShapeDtypeStruct((B, n_pad), x.dtype),
        grid_spec=pl.GridSpec(
            grid=grid,
            in_specs=[
                # Per-sample scale column: block index only changes with the
                # row tile, so it is not re-fetched on every grid step.
                pl.BlockSpec((tile_b, 1), lambda i, j: (i, 0)),
                pl.BlockSpec((tile_b, tile_n), lambda i, j: (i, j)),
            ],
            out_specs=pl.BlockSpec((tile_b, tile_n), lambda i, j: (i, j)),
        ),
        input_output_aliases=alias,
        compiler_params=pltpu.CompilerParams(
            dimension_semantics=("parallel", "parallel"),
            vmem_limit_bytes=vmem_limit,
        ),
    )(scale, x_flat)

    if n_pad != N:
        out_flat = out_flat[:, :N]
    return out_flat.reshape(orig_shape)


def drop_path_pallas(x, drop_prob: float, key, training: bool = True,
                     in_place: bool = False):
    """Pallas implementation of drop_path(x, drop_prob, training)."""
    if drop_prob == 0.0 or not training:
        return x
    if not 0.0 <= drop_prob < 1.0:
        raise ValueError(f"drop_prob must be in [0, 1), got {drop_prob}")
    return _drop_path_impl(x, key, keep_prob=float(1.0 - drop_prob),
                           in_place=in_place)


if __name__ == "__main__":
    key = jax.random.PRNGKey(0)
    k_x, k_mask = jax.random.split(key)

    # Small shapes consistent with DropPath usage on residual-branch features.
    B, C, H, W = 2, 4, 16, 16
    x = jax.random.normal(k_x, (B, C, H, W), dtype=jnp.float32)
    drop_prob = 0.25
    keep_prob = 1.0 - drop_prob

    # training=True path (the only path that does compute).
    out = drop_path_pallas(x, drop_prob, k_mask, training=True)
    out = jax.block_until_ready(out)

    # Reference check (same RNG draw / mask math as the kernel glue).
    u = jax.random.uniform(k_mask, (B,), dtype=x.dtype)
    mask_ref = jnp.floor(keep_prob + u).reshape(B, 1, 1, 1)
    ref = (x / keep_prob) * mask_ref
    assert jnp.allclose(out, ref, atol=1e-6, rtol=1e-6), "mismatch vs reference"

    # Optional in-place variant produces identical values.
    out_ip = drop_path_pallas(x, drop_prob, k_mask, training=True, in_place=True)
    out_ip = jax.block_until_ready(out_ip)
    assert jnp.allclose(out_ip, ref, atol=1e-6, rtol=1e-6), "in-place mismatch"

    # eval / drop_prob=0 paths are identity (pure glue, no kernel launch).
    assert jnp.array_equal(drop_path_pallas(x, drop_prob, k_mask, training=False), x)
    assert jnp.array_equal(drop_path_pallas(x, 0.0, k_mask, training=True), x)

    print("KERNEL_OK")
</pallas_src>

<mosaic_0001>
module attributes {stable_mosaic.version = 11 : i64} {
  func.func @_drop_path_kernel(%arg0: i32, %arg1: i32, %arg2: memref<2x1xf32, #tpu.memory_space<vmem>>, %arg3: memref<2x1024xf32, #tpu.memory_space<vmem>>, %arg4: memref<2x1024xf32, #tpu.memory_space<vmem>>) attributes {dimension_semantics = [#tpu.dimension_semantics<parallel>, #tpu.dimension_semantics<parallel>], iteration_bounds = array<i64: 1, 1>, scalar_prefetch = 0 : i64, scratch_operands = 0 : i64, tpu.core_type = #tpu.core_type<tc>, window_params = [{transform_indices = @transform_0, window_bounds = array<i64: 2, 1>}, {transform_indices = @transform_1, window_bounds = array<i64: 2, 1024>}, {transform_indices = @transform_2, window_bounds = array<i64: 2, 1024>}]} {
    %c0 = arith.constant 0 : index
    %c0_0 = arith.constant 0 : index
    %0 = vector.load %arg3[%c0, %c0_0] : memref<2x1024xf32, #tpu.memory_space<vmem>>, vector<2x1024xf32>
    %c0_1 = arith.constant 0 : index
    %c0_2 = arith.constant 0 : index
    %1 = vector.load %arg2[%c0_1, %c0_2] : memref<2x1xf32, #tpu.memory_space<vmem>>, vector<2x1xf32>
    %2 = vector.broadcast %1 : vector<2x1xf32> to vector<2x1024xf32>
    %3 = arith.mulf %0, %2 : vector<2x1024xf32>
    %c0_3 = arith.constant 0 : index
    %c0_4 = arith.constant 0 : index
    %4 = vector.load %arg4[%c0_3, %c0_4] : memref<2x1024xf32, #tpu.memory_space<vmem>>, vector<2x1024xf32>
    tpu.vector_store %arg4[%c0_3, %c0_4], %3 {strides = array<i32>} : memref<2x1024xf32, #tpu.memory_space<vmem>>, vector<2x1024xf32>,
    return
  }
  func.func @transform_0(%arg0: i32, %arg1: i32) -> (i32, i32) {
    %c0_i32 = arith.constant 0 : i32
    %c0_i32_0 = arith.constant 0 : i32
    return %arg0, %c0_i32 : i32, i32
  }
  func.func @transform_1(%arg0: i32, %arg1: i32) -> (i32, i32) {
    %c0_i32 = arith.constant 0 : i32
    return %arg0, %arg1 : i32, i32
  }
  func.func @transform_2(%arg0: i32, %arg1: i32) -> (i32, i32) {
    %c0_i32 = arith.constant 0 : i32
    return %arg0, %arg1 : i32, i32
  }
}

</mosaic_0001>

<llo_original>
// kernel: _drop_path_impl.1
$region0: #{_drop_path_impl.1}
  #allocation0 [shape = 'u32[]', space=smem, size = 0x4, offset = 0x4, fixed_abs, tag = 'smem constant byte address 0x4 - core index']
  #allocation1 [shape = 'u32[144,128]{1,0:T(1,128)}', space=vmem, size = 0x12000, scoped, tag = 'internal scratch']
  %s0 = inlined_call_operand.vmem [shape: f32[2,1], index: 0, kind: input, shape index: {}]
  %s1 = inlined_call_operand.vmem [shape: f32[2,1024], index: 1, kind: input, shape index: {}]
  %s2 = inlined_call_operand.vmem [shape: f32[2,1024], index: 2, kind: output, shape index: {}]
  %s3 = sld [smem:[#allocation0]]
  $region18: #{_drop_path_impl.1} parent=0
    _
  %s5 = ssub.s32 1, %s3
  %s6 = scalar_select 0, %s5, %s3
  // Predicated region
  $region2: #{_drop_path_impl.1} parent=0 // pred_check
    _
  $region3: #{_drop_path_impl.1} parent=0 // pred_check_branch
    %8 = sbr.rel (0) target = $region5
  $region4: #{_drop_path_impl.1} parent=0 // pred_region
    _
  $region5: #{_drop_path_impl.1} parent=0 // pred_fallthru
    _
  // Predicated region
  $region6: #{_drop_path_impl.1} parent=0 // pred_check
    _
  $region7: #{_drop_path_impl.1} parent=0 // pred_check_branch
    %10 = sbr.rel (0) target = $region9
  $region8: #{_drop_path_impl.1} parent=0 // pred_region
    _
  $region9: #{_drop_path_impl.1} parent=0 // pred_fallthru
    _
  %v11 = vld [vmem:[%s1] sm:$0xff]
  %v12 = vld [vmem:[%s1 + $0x8] sm:$0xff]
  %v13 = vld [vmem:[%s0] sm:$0x3]
  %15 = vset.pattern.permute.xlu0 0
  %16 = vperm.xlu0 %15, %v13
  %v17 = vpop.permute.xlu0 %16
  %v19 = vunpack.c.l.s4 269488144
  %v20 = vunpack.c.0.s8 %v19
  %v21 = vlaneseq
  %v22 = vshrl.u32 %v21, 7
  %v23 = vsub.s32 %v20, %v22
  %v24 = vrot.slane %v17, %v23
  %v26 = vmul.f32 %v11, %v24
  %v27 = vmul.f32 %v12, %v24
  %28 = vst [vmem:[%s2] sm:$0xff] %v26
  %29 = vst [vmem:[%s2 + $0x8] sm:$0xff] %v27
  // Predicated region
  $region10: #{_drop_path_impl.1} parent=0 // pred_check
    _
  $region11: #{_drop_path_impl.1} parent=0 // pred_check_branch
    %31 = sbr.rel (0) target = $region13
  $region12: #{_drop_path_impl.1} parent=0 // pred_region
    _
  $region13: #{_drop_path_impl.1} parent=0 // pred_fallthru
    _
  // Predicated region
  $region14: #{_drop_path_impl.1} parent=0 // pred_check
    _
  $region15: #{_drop_path_impl.1} parent=0 // pred_check_branch
    %33 = sbr.rel (0) target = $region17
  $region16: #{_drop_path_impl.1} parent=0 // pred_region
    _
  $region17: #{_drop_path_impl.1} parent=0 // pred_fallthru
    _

</llo_original>
